<compile_context>
chip_gen: v7x
topology: tpu7x:2x2x1
jax: 0.10.0
libtpu: 0.0.40
codegen_flags: <defaults>
</compile_context>

<pallas_src>
import functools
import math

import jax
import jax.numpy as jnp
from jax import lax
from jax.experimental import pallas as pl
from jax.experimental.pallas import tpu as pltpu


def _round_up(x, m):
    return ((x + m - 1) // m) * m


# ----------------------------------------------------------------------------
# Fused kernel: both Q-branches, all layers, one launch.
# refs = (s, a, w1s, w1a, b1, [w_i, b_i]*, wout_t, bout, out)
# out block is (2, tb): row 0 = q1, row 1 = q2 (lane-dense over the batch).
# ----------------------------------------------------------------------------
def _fused_critic_kernel(*refs, n_hidden, activation):
    s_ref, a_ref = refs[0], refs[1]
    w1s_ref, w1a_ref, b1_ref = refs[2], refs[3], refs[4]
    idx = 5
    hidden_refs = []
    for _ in range(n_hidden - 1):
        hidden_refs.append((refs[idx], refs[idx + 1]))
        idx += 2
    wout_t_ref, bout_ref = refs[idx], refs[idx + 1]
    o_ref = refs[idx + 2]

    def act(x):
        if activation == "relu":
            return jnp.maximum(x, 0.0)
        if activation == "tanh":
            return jnp.tanh(x)
        raise ValueError(f"unsupported activation: {activation}")

    # Layer 1: state branch on the MXU (concat(s, a) @ W1 == s @ W1[:S] + ...)
    h = (jnp.dot(s_ref[...], w1s_ref[...], preferred_element_type=jnp.float32)
         + b1_ref[...])
    # Action branch: action_dim is tiny (K=2), so instead of wasting a full
    # MXU pass we add it with VPU broadcast-FMAs (lane-broadcast of a column
    # times a sublane-broadcast weight row).
    for j in range(a_ref.shape[1]):
        h = h + a_ref[:, j:j + 1] * w1a_ref[j:j + 1, :]
    h = act(h)

    # Remaining hidden layers: block-diagonal stacked twin-Q weights.
    for w_ref, b_ref in hidden_refs:
        h = act(jnp.dot(h, w_ref[...], preferred_element_type=jnp.float32)
                + b_ref[...])

    # Output layer, computed transposed: (2, 2*Hlast) . (tb, 2*Hlast)^T
    # -> (2, tb).  Same dot_general pattern as q @ k.T (contract last dims),
    # so the lane-dense (2, tb) result is produced natively (no transpose op).
    q_t = lax.dot_general(
        wout_t_ref[...], h,
        dimension_numbers=(((1,), (1,)), ((), ())),
        preferred_element_type=jnp.float32)
    q_t = q_t + bout_ref[...]            # (2, 1) bias broadcast over lanes
    o_ref[...] = q_t.astype(o_ref.dtype)


# ----------------------------------------------------------------------------
# Parameter construction (PyTorch nn.Linear default init) and twin-Q fusing
# ----------------------------------------------------------------------------
def init_critic_params(key, state_dim, action_dim, hidden_layers):
    """Per-branch params: weight (in, out) pre-transposed, bias (1, out)."""
    params = {"q1": [], "q2": []}
    for branch in ("q1", "q2"):
        in_dim = state_dim + action_dim
        for out_dim in list(hidden_layers) + [1]:
            key, kw, kb = jax.random.split(key, 3)
            bound = 1.0 / math.sqrt(in_dim)
            w = jax.random.uniform(kw, (in_dim, out_dim), jnp.float32,
                                   minval=-bound, maxval=bound)
            b = jax.random.uniform(kb, (1, out_dim), jnp.float32,
                                   minval=-bound, maxval=bound)
            params[branch].append((w, b))
            in_dim = out_dim
    return params


def _block_diag(a, b):
    z_top = jnp.zeros((a.shape[0], b.shape[1]), a.dtype)
    z_bot = jnp.zeros((b.shape[0], a.shape[1]), a.dtype)
    return jnp.concatenate(
        [jnp.concatenate([a, z_top], axis=1),
         jnp.concatenate([z_bot, b], axis=1)], axis=0)


def fuse_critic_params(params, state_dim):
    """Stack twin-Q branches into a single set of fused weights (trace time)."""
    q1, q2 = params["q1"], params["q2"]
    assert len(q1) >= 2, "expect at least one hidden layer"
    (w1A, b1A), (w1B, b1B) = q1[0], q2[0]
    w1 = jnp.concatenate([w1A, w1B], axis=1)               # (S+A, 2*H1)
    fused = {
        "w1s": w1[:state_dim],                             # (S, 2*H1)
        "w1a": w1[state_dim:],                             # (A, 2*H1)
        "b1": jnp.concatenate([b1A, b1B], axis=1),         # (1, 2*H1)
        "hidden": [],
    }
    for (wA, bA), (wB, bB) in zip(q1[1:-1], q2[1:-1]):
        fused["hidden"].append((_block_diag(wA, wB),       # (2*H, 2*H')
                                jnp.concatenate([bA, bB], axis=1)))
    (woA, boA), (woB, boB) = q1[-1], q2[-1]
    fused["wout_t"] = _block_diag(woA, woB).T              # (2, 2*Hlast)
    fused["bout"] = jnp.concatenate([boA, boB], axis=1).T  # (2, 1)
    return fused


# ----------------------------------------------------------------------------
# Forward: one fused pallas_call over a batch-parallel grid
# ----------------------------------------------------------------------------
def critic_forward(fused, s, a, activation_function="relu",
                   block_b=4096, min_grid_steps=1):
    """Returns (q1, q2), each (B, 1) float32.

    block_b:        max batch rows per tile (large: kernel is overhead-bound).
    min_grid_steps: set to 2 on v7x so both TensorCores get a "parallel" tile;
                    leave at 1 on single-TC v5e/v6e (fewest grid steps wins).
    """
    B, state_dim = s.shape
    action_dim = a.shape[1]
    n_hidden = len(fused["hidden"]) + 1

    if B <= block_b and min_grid_steps <= 1:
        tb, Bp = B, B                               # single full-array block
    else:
        # When gridding, the tile must be a multiple of 128 (lane dim of the
        # (2, tb) output block) and of 8 (sublane dim of the input blocks).
        steps = max(min_grid_steps, pl.cdiv(B, block_b))
        tb = max(128, _round_up(pl.cdiv(B, steps), 128))
        tb = min(tb, _round_up(block_b, 128))
        Bp = _round_up(B, tb)
        if Bp != B:
            s = jnp.pad(s, ((0, Bp - B), (0, 0)))
            a = jnp.pad(a, ((0, Bp - B), (0, 0)))
    grid = (Bp // tb,)

    weight_args = [fused["w1s"], fused["w1a"], fused["b1"]]
    for w, b in fused["hidden"]:
        weight_args += [w, b]
    weight_args += [fused["wout_t"], fused["bout"]]

    def resident(arr):
        # Constant index_map -> weights stay VMEM-resident across batch tiles.
        # (Would ideally be single-buffered; second buffer is negligible here.)
        return pl.BlockSpec(arr.shape, lambda i: (0, 0))

    in_specs = [pl.BlockSpec((tb, state_dim), lambda i: (i, 0)),
                pl.BlockSpec((tb, action_dim), lambda i: (i, 0))]
    in_specs += [resident(w) for w in weight_args]
    out_spec = pl.BlockSpec((2, tb), lambda i: (0, i))     # lane-dense output

    # Advisory cost estimate for the XLA scheduler.
    h1 = fused["w1s"].shape[1]
    flops = 2 * Bp * (state_dim + action_dim) * h1
    for w, _ in fused["hidden"]:
        flops += 2 * Bp * w.shape[0] * w.shape[1]
    flops += 2 * Bp * fused["wout_t"].shape[1] * 2
    transcendentals = 0
    if activation_function == "tanh":
        transcendentals = Bp * (h1 + sum(w.shape[1] for w, _ in fused["hidden"]))
    bytes_accessed = 4 * (Bp * (state_dim + action_dim)
                          + sum(int(w.size) for w in weight_args)
                          + 2 * Bp)

    kernel = functools.partial(_fused_critic_kernel,
                               n_hidden=n_hidden,
                               activation=activation_function)
    out = pl.pallas_call(
        kernel,
        out_shape=jax.ShapeDtypeStruct((2, Bp), jnp.float32),
        grid=grid,
        in_specs=in_specs,
        out_specs=out_spec,
        compiler_params=pltpu.CompilerParams(
            dimension_semantics=("parallel",),
            vmem_limit_bytes=32 * 1024 * 1024),
        cost_estimate=pl.CostEstimate(flops=int(flops),
                                      transcendentals=int(transcendentals),
                                      bytes_accessed=int(bytes_accessed)),
    )(s, a, *weight_args)

    q1 = out[0, :B][:, None]
    q2 = out[1, :B][:, None]
    return q1, q2


# ----------------------------------------------------------------------------
# Pure-JAX reference (unfused, matches the PyTorch module's math)
# ----------------------------------------------------------------------------
def _ref_forward(params, s, a, activation_function="relu"):
    act = {"relu": lambda x: jnp.maximum(x, 0.0),
           "tanh": jnp.tanh}[activation_function]
    sa = jnp.concatenate([s, a], axis=-1)

    def branch(layers, x):
        for (w, b) in layers[:-1]:
            x = act(x @ w + b)
        w, b = layers[-1]
        return x @ w + b

    return branch(params["q1"], sa), branch(params["q2"], sa)


# ----------------------------------------------------------------------------
# Demo
# ----------------------------------------------------------------------------
if __name__ == "__main__":
    batch = 4
    state_dim = 24
    action_dim = 2
    hidden_layers = [32, 32]
    activation_function = "relu"

    key = jax.random.PRNGKey(0)
    k_params, k_s, k_a, k_s2, k_a2, k_s3, k_a3 = jax.random.split(key, 7)

    params = init_critic_params(k_params, state_dim, action_dim, hidden_layers)
    fused = fuse_critic_params(params, state_dim)

    # Small-shape run (single block).
    s = jax.random.normal(k_s, (batch, state_dim), jnp.float32)
    a = jax.random.normal(k_a, (batch, action_dim), jnp.float32)
    q1, q2 = critic_forward(fused, s, a, activation_function)
    jax.block_until_ready((q1, q2))
    r1, r2 = _ref_forward(params, s, a, activation_function)
    assert q1.shape == (batch, 1) and q2.shape == (batch, 1)
    assert jnp.allclose(q1, r1, atol=1e-4) and jnp.allclose(q2, r2, atol=1e-4)

    # Larger batch, still single block (B <= block_b).
    big = 512
    s2 = jax.random.normal(k_s2, (big, state_dim), jnp.float32)
    a2 = jax.random.normal(k_a2, (big, action_dim), jnp.float32)
    q1b, q2b = critic_forward(fused, s2, a2, activation_function)
    jax.block_until_ready((q1b, q2b))
    r1b, r2b = _ref_forward(params, s2, a2, activation_function)
    assert jnp.allclose(q1b, r1b, atol=1e-4) and jnp.allclose(q2b, r2b, atol=1e-4)

    # Multi-tile path (v7x-style: >=2 parallel grid steps) with batch padding.
    odd = 600
    s3 = jax.random.normal(k_s3, (odd, state_dim), jnp.float32)
    a3 = jax.random.normal(k_a3, (odd, action_dim), jnp.float32)
    q1c, q2c = critic_forward(fused, s3, a3, activation_function,
                              min_grid_steps=2)
    jax.block_until_ready((q1c, q2c))
    r1c, r2c = _ref_forward(params, s3, a3, activation_function)
    assert q1c.shape == (odd, 1) and q2c.shape == (odd, 1)
    assert jnp.allclose(q1c, r1c, atol=1e-4) and jnp.allclose(q2c, r2c, atol=1e-4)

    print("KERNEL_OK")
</pallas_src>

<mosaic_0001>
module attributes {stable_mosaic.version = 11 : i64} {
  func.func @_fused_critic_kernel(%arg0: i32, %arg1: memref<4x24xf32, #tpu.memory_space<vmem>>, %arg2: memref<4x2xf32, #tpu.memory_space<vmem>>, %arg3: memref<24x64xf32, #tpu.memory_space<vmem>>, %arg4: memref<2x64xf32, #tpu.memory_space<vmem>>, %arg5: memref<1x64xf32, #tpu.memory_space<vmem>>, %arg6: memref<64x64xf32, #tpu.memory_space<vmem>>, %arg7: memref<1x64xf32, #tpu.memory_space<vmem>>, %arg8: memref<2x64xf32, #tpu.memory_space<vmem>>, %arg9: memref<2x1xf32, #tpu.memory_space<vmem>>, %arg10: memref<2x4xf32, #tpu.memory_space<vmem>>) attributes {dimension_semantics = [#tpu.dimension_semantics<parallel>], iteration_bounds = array<i64: 1>, scalar_prefetch = 0 : i64, scratch_operands = 0 : i64, tpu.core_type = #tpu.core_type<tc>, window_params = [{transform_indices = @transform_0, window_bounds = array<i64: 4, 24>}, {transform_indices = @transform_1, window_bounds = array<i64: 4, 2>}, {pipeline_mode = #tpu.pipeline_mode<synchronous>, transform_indices = @transform_2, window_bounds = array<i64: 24, 64>}, {pipeline_mode = #tpu.pipeline_mode<synchronous>, transform_indices = @transform_3, window_bounds = array<i64: 2, 64>}, {pipeline_mode = #tpu.pipeline_mode<synchronous>, transform_indices = @transform_4, window_bounds = array<i64: 1, 64>}, {pipeline_mode = #tpu.pipeline_mode<synchronous>, transform_indices = @transform_5, window_bounds = array<i64: 64, 64>}, {pipeline_mode = #tpu.pipeline_mode<synchronous>, transform_indices = @transform_6, window_bounds = array<i64: 1, 64>}, {pipeline_mode = #tpu.pipeline_mode<synchronous>, transform_indices = @transform_7, window_bounds = array<i64: 2, 64>}, {pipeline_mode = #tpu.pipeline_mode<synchronous>, transform_indices = @transform_8, window_bounds = array<i64: 2, 1>}, {transform_indices = @transform_9, window_bounds = array<i64: 2, 4>}]} {
    %c0 = arith.constant 0 : index
    %c0_0 = arith.constant 0 : index
    %0 = vector.load %arg1[%c0, %c0_0] : memref<4x24xf32, #tpu.memory_space<vmem>>, vector<4x24xf32>
    %c0_1 = arith.constant 0 : index
    %c0_2 = arith.constant 0 : index
    %1 = vector.load %arg3[%c0_1, %c0_2] : memref<24x64xf32, #tpu.memory_space<vmem>>, vector<24x64xf32>
    %cst = arith.constant dense<0.000000e+00> : vector<4x64xf32>
    %2 = tpu.matmul %0, %1, %cst {dimension_numbers = #tpu.dot_dimension_numbers<[1], [0], [0], [1], [0, 0, 1, 1], [], []>} : vector<4x24xf32>, vector<24x64xf32>, vector<4x64xf32> -> vector<4x64xf32>
    %c0_3 = arith.constant 0 : index
    %c0_4 = arith.constant 0 : index
    %3 = vector.load %arg5[%c0_3, %c0_4] : memref<1x64xf32, #tpu.memory_space<vmem>>, vector<1x64xf32>
    %4 = vector.broadcast %3 : vector<1x64xf32> to vector<4x64xf32>
    %5 = arith.addf %2, %4 : vector<4x64xf32>
    %c0_5 = arith.constant 0 : index
    %c0_6 = arith.constant 0 : index
    %6 = vector.load %arg2[%c0_5, %c0_6] : memref<4x2xf32, #tpu.memory_space<vmem>>, vector<4x1xf32>
    %c0_7 = arith.constant 0 : index
    %c0_8 = arith.constant 0 : index
    %7 = vector.load %arg4[%c0_7, %c0_8] : memref<2x64xf32, #tpu.memory_space<vmem>>, vector<1x64xf32>
    %8 = vector.broadcast %6 : vector<4x1xf32> to vector<4x64xf32>
    %9 = vector.broadcast %7 : vector<1x64xf32> to vector<4x64xf32>
    %10 = arith.mulf %8, %9 : vector<4x64xf32>
    %11 = arith.addf %5, %10 : vector<4x64xf32>
    %c0_9 = arith.constant 0 : index
    %c1 = arith.constant 1 : index
    %12 = vector.load %arg2[%c0_9, %c1] : memref<4x2xf32, #tpu.memory_space<vmem>>, vector<4x1xf32>
    %c1_10 = arith.constant 1 : index
    %c0_11 = arith.constant 0 : index
    %13 = vector.load %arg4[%c1_10, %c0_11] : memref<2x64xf32, #tpu.memory_space<vmem>>, vector<1x64xf32>
    %14 = vector.broadcast %12 : vector<4x1xf32> to vector<4x64xf32>
    %15 = vector.broadcast %13 : vector<1x64xf32> to vector<4x64xf32>
    %16 = arith.mulf %14, %15 : vector<4x64xf32>
    %17 = arith.addf %11, %16 : vector<4x64xf32>
    %cst_12 = arith.constant 0.000000e+00 : f32
    %18 = vector.broadcast %cst_12 : f32 to vector<4x64xf32>
    %19 = arith.maximumf %17, %18 : vector<4x64xf32>
    %c0_13 = arith.constant 0 : index
    %c0_14 = arith.constant 0 : index
    %20 = vector.load %arg6[%c0_13, %c0_14] : memref<64x64xf32, #tpu.memory_space<vmem>>, vector<64x64xf32>
    %cst_15 = arith.constant dense<0.000000e+00> : vector<4x64xf32>
    %21 = tpu.matmul %19, %20, %cst_15 {dimension_numbers = #tpu.dot_dimension_numbers<[1], [0], [0], [1], [0, 0, 1, 1], [], []>} : vector<4x64xf32>, vector<64x64xf32>, vector<4x64xf32> -> vector<4x64xf32>
    %c0_16 = arith.constant 0 : index
    %c0_17 = arith.constant 0 : index
    %22 = vector.load %arg7[%c0_16, %c0_17] : memref<1x64xf32, #tpu.memory_space<vmem>>, vector<1x64xf32>
    %23 = vector.broadcast %22 : vector<1x64xf32> to vector<4x64xf32>
    %24 = arith.addf %21, %23 : vector<4x64xf32>
    %cst_18 = arith.constant 0.000000e+00 : f32
    %25 = vector.broadcast %cst_18 : f32 to vector<4x64xf32>
    %26 = arith.maximumf %24, %25 : vector<4x64xf32>
    %c0_19 = arith.constant 0 : index
    %c0_20 = arith.constant 0 : index
    %27 = vector.load %arg8[%c0_19, %c0_20] : memref<2x64xf32, #tpu.memory_space<vmem>>, vector<2x64xf32>
    %cst_21 = arith.constant dense<0.000000e+00> : vector<2x4xf32>
    %28 = tpu.matmul %27, %26, %cst_21 {dimension_numbers = #tpu.dot_dimension_numbers<[1], [1], [0], [0], [0, 0, 1, 0], [], []>} : vector<2x64xf32>, vector<4x64xf32>, vector<2x4xf32> -> vector<2x4xf32>
    %c0_22 = arith.constant 0 : index
    %c0_23 = arith.constant 0 : index
    %29 = vector.load %arg9[%c0_22, %c0_23] : memref<2x1xf32, #tpu.memory_space<vmem>>, vector<2x1xf32>
    %30 = vector.broadcast %29 : vector<2x1xf32> to vector<2x4xf32>
    %31 = arith.addf %28, %30 : vector<2x4xf32>
    %c0_24 = arith.constant 0 : index
    %c0_25 = arith.constant 0 : index
    %32 = vector.load %arg10[%c0_24, %c0_25] : memref<2x4xf32, #tpu.memory_space<vmem>>, vector<2x4xf32>
    tpu.vector_store %arg10[%c0_24, %c0_25], %31 {strides = array<i32>} : memref<2x4xf32, #tpu.memory_space<vmem>>, vector<2x4xf32>,
    return
  }
  func.func @transform_0(%arg0: i32) -> (i32, i32) {
    %c0_i32 = arith.constant 0 : i32
    %c0_i32_0 = arith.constant 0 : i32
    return %arg0, %c0_i32 : i32, i32
  }
  func.func @transform_1(%arg0: i32) -> (i32, i32) {
    %c0_i32 = arith.constant 0 : i32
    %c0_i32_0 = arith.constant 0 : i32
    return %arg0, %c0_i32 : i32, i32
  }
  func.func @transform_2(%arg0: i32) -> (i32, i32) {
    %c0_i32 = arith.constant 0 : i32
    %c0_i32_0 = arith.constant 0 : i32
    %c0_i32_1 = arith.constant 0 : i32
    return %c0_i32, %c0_i32_0 : i32, i32
  }
  func.func @transform_3(%arg0: i32) -> (i32, i32) {
    %c0_i32 = arith.constant 0 : i32
    %c0_i32_0 = arith.constant 0 : i32
    %c0_i32_1 = arith.constant 0 : i32
    return %c0_i32, %c0_i32_0 : i32, i32
  }
  func.func @transform_4(%arg0: i32) -> (i32, i32) {
    %c0_i32 = arith.constant 0 : i32
    %c0_i32_0 = arith.constant 0 : i32
    %c0_i32_1 = arith.constant 0 : i32
    return %c0_i32, %c0_i32_0 : i32, i32
  }
  func.func @transform_5(%arg0: i32) -> (i32, i32) {
    %c0_i32 = arith.constant 0 : i32
    %c0_i32_0 = arith.constant 0 : i32
    %c0_i32_1 = arith.constant 0 : i32
    return %c0_i32, %c0_i32_0 : i32, i32
  }
  func.func @transform_6(%arg0: i32) -> (i32, i32) {
    %c0_i32 = arith.constant 0 : i32
    %c0_i32_0 = arith.constant 0 : i32
    %c0_i32_1 = arith.constant 0 : i32
    return %c0_i32, %c0_i32_0 : i32, i32
  }
  func.func @transform_7(%arg0: i32) -> (i32, i32) {
    %c0_i32 = arith.constant 0 : i32
    %c0_i32_0 = arith.constant 0 : i32
    %c0_i32_1 = arith.constant 0 : i32
    return %c0_i32, %c0_i32_0 : i32, i32
  }
  func.func @transform_8(%arg0: i32) -> (i32, i32) {
    %c0_i32 = arith.constant 0 : i32
    %c0_i32_0 = arith.constant 0 : i32
    %c0_i32_1 = arith.constant 0 : i32
    return %c0_i32, %c0_i32_0 : i32, i32
  }
  func.func @transform_9(%arg0: i32) -> (i32, i32) {
    %c0_i32 = arith.constant 0 : i32
    %c0_i32_0 = arith.constant 0 : i32
    return %c0_i32, %arg0 : i32, i32
  }
}

</mosaic_0001>

<llo_original>
// kernel: tpu_custom_call.1
$region0: #{tpu_custom_call.1}
  #allocation0 [shape = 'u32[]', space=smem, size = 0x4, offset = 0x4, fixed_abs, tag = 'smem constant byte address 0x4 - core index']
  #allocation1 [shape = 'u32[144,128]{1,0:T(1,128)}', space=vmem, size = 0x12000, scoped, tag = 'internal scratch']
  %s0 = inlined_call_operand.vmem [shape: f32[4,24], index: 0, kind: input, shape index: {}]
  %s1 = inlined_call_operand.vmem [shape: f32[4,2], index: 1, kind: input, shape index: {}]
  %s2 = inlined_call_operand.hbm [shape: f32[24,64], index: 2, kind: input, shape index: {}]
  %s3 = inlined_call_operand.vmem [shape: f32[2,64], index: 3, kind: input, shape index: {}]
  %s4 = inlined_call_operand.vmem [shape: f32[1,64], index: 4, kind: input, shape index: {}]
  %s5 = inlined_call_operand.hbm [shape: f32[64,64], index: 5, kind: input, shape index: {}]
  %s6 = inlined_call_operand.vmem [shape: f32[1,64], index: 6, kind: input, shape index: {}]
  %s7 = inlined_call_operand.vmem [shape: f32[2,64], index: 7, kind: input, shape index: {}]
  %s8 = inlined_call_operand.vmem [shape: f32[2,1], index: 8, kind: input, shape index: {}]
  %s9 = inlined_call_operand.hbm [shape: f32[2,4], index: 9, kind: output, shape index: {}]
  %s10 = sld [smem:[#allocation0]]
  $region54: #{tpu_custom_call.1} parent=0
    _
  %s12 = ssub.s32 1, %s10
  %s13 = scalar_select 0, %s12, %s10
  $region1: #{tpu_custom_call.1} parent=0
    #allocation2 [shape = 'u8[12288]{0}', space=vmem, size = 0x3000, scoped, tag = 'input window, operand 2, single buffered']
    #allocation3 [shape = 's32[1]{0}', space=sflag, size = 0x4, scoped, tag = 'scoped memory for tpu_custom_call.1']
    #allocation4 [shape = 's32[1]{0}', space=sflag, size = 0x4, scoped, tag = 'scoped memory for tpu_custom_call.1']
    #allocation5 [shape = 'u8[32768]{0}', space=vmem, size = 0x8000, scoped, tag = 'input window, operand 5, single buffered']
    #allocation6 [shape = 's32[1]{0}', space=sflag, size = 0x4, scoped, tag = 'scoped memory for tpu_custom_call.1']
    #allocation7 [shape = 'u8[1024]{0}', space=vmem, size = 0x400, scoped, tag = 'output window, operand 0, single buffered']
    %14 = vsyncpa [#allocation3], 0
    %15 = vsyncpa [#allocation6], 0
    %16 = vsyncpa [#allocation4], 0
    // Predicated region
    $region2: #{tpu_custom_call.1} parent=1 // pred_check
      _
    $region3: #{tpu_custom_call.1} parent=1 // pred_check_branch
      %18 = sbr.rel (0) target = $region5
    $region4: #{tpu_custom_call.1} parent=1 // pred_region
      _
    $region5: #{tpu_custom_call.1} parent=1 // pred_fallthru
      _
    // Predicated region
    $region6: #{tpu_custom_call.1} parent=1 // pred_check
      _
    $region7: #{tpu_custom_call.1} parent=1 // pred_check_branch
      %20 = sbr.rel (0) target = $region9
    $region8: #{tpu_custom_call.1} parent=1 // pred_region
      _
    $region9: #{tpu_custom_call.1} parent=1 // pred_fallthru
      _
    // Predicated region
    $region10: #{tpu_custom_call.1} parent=1 // pred_check
      _
    $region11: #{tpu_custom_call.1} parent=1 // pred_check_branch
      %22 = sbr.rel (0) target = $region13
    $region12: #{tpu_custom_call.1} parent=1 // pred_region
      %s24 = ssub.s32 384, 384
      %25 = vsyncadd [#allocation3], %s24
      %s26 = sshll.u32 [#allocation2], 4
      %s27 = int_to_ptr.vmem [resolvable:$true] %s26
      %32 = dma.hbm_to_vmem [thread:$0]  %s2, 384, %s27, [#allocation3], 128, 128, 8
    $region13: #{tpu_custom_call.1} parent=1 // pred_fallthru
      _
    // Predicated region
    $region14: #{tpu_custom_call.1} parent=1 // pred_check
      _
    $region15: #{tpu_custom_call.1} parent=1 // pred_check_branch
      %34 = sbr.rel (0) target = $region17
    $region16: #{tpu_custom_call.1} parent=1 // pred_region
      _
    $region17: #{tpu_custom_call.1} parent=1 // pred_fallthru
      _
    // Predicated region
    $region18: #{tpu_custom_call.1} parent=1 // pred_check
      _
    $region19: #{tpu_custom_call.1} parent=1 // pred_check_branch
      %36 = sbr.rel (0) target = $region21
    $region20: #{tpu_custom_call.1} parent=1 // pred_region
      _
    $region21: #{tpu_custom_call.1} parent=1 // pred_fallthru
      _
    // Predicated region
    $region22: #{tpu_custom_call.1} parent=1 // pred_check
      _
    $region23: #{tpu_custom_call.1} parent=1 // pred_check_branch
      %38 = sbr.rel (0) target = $region25
    $region24: #{tpu_custom_call.1} parent=1 // pred_region
      %s40 = ssub.s32 1024, 1024
      %41 = vsyncadd [#allocation6], %s40
      %s42 = sshll.u32 [#allocation5], 4
      %s43 = int_to_ptr.vmem [resolvable:$true] %s42
      %48 = dma.hbm_to_vmem [thread:$0]  %s5, 1024, %s43, [#allocation6], 128, 128, 8
    $region25: #{tpu_custom_call.1} parent=1 // pred_fallthru
      _
    // Predicated region
    $region26: #{tpu_custom_call.1} parent=1 // pred_check
      _
    $region27: #{tpu_custom_call.1} parent=1 // pred_check_branch
      %50 = sbr.rel (0) target = $region29
    $region28: #{tpu_custom_call.1} parent=1 // pred_region
      _
    $region29: #{tpu_custom_call.1} parent=1 // pred_fallthru
      _
    // Predicated region
    $region30: #{tpu_custom_call.1} parent=1 // pred_check
      _
    $region31: #{tpu_custom_call.1} parent=1 // pred_check_branch
      %52 = sbr.rel (0) target = $region33
    $region32: #{tpu_custom_call.1} parent=1 // pred_region
      _
    $region33: #{tpu_custom_call.1} parent=1 // pred_fallthru
      _
    // Predicated region
    $region34: #{tpu_custom_call.1} parent=1 // pred_check
      _
    $region35: #{tpu_custom_call.1} parent=1 // pred_check_branch
      %54 = sbr.rel (0) target = $region37
    $region36: #{tpu_custom_call.1} parent=1 // pred_region
      _
    $region37: #{tpu_custom_call.1} parent=1 // pred_fallthru
      _
    // Predicated region
    $region38: #{tpu_custom_call.1} parent=1 // pred_check
      _
    $region39: #{tpu_custom_call.1} parent=1 // pred_check_branch
      %56 = sbr.rel (0) target = $region41
    $region40: #{tpu_custom_call.1} parent=1 // pred_region
      %57 = dma.done [#allocation3], 384
    $region41: #{tpu_custom_call.1} parent=1 // pred_fallthru
      _
    // Predicated region
    $region42: #{tpu_custom_call.1} parent=1 // pred_check
      _
    $region43: #{tpu_custom_call.1} parent=1 // pred_check_branch
      %59 = sbr.rel (0) target = $region45
    $region44: #{tpu_custom_call.1} parent=1 // pred_region
      %60 = dma.done [#allocation6], 1024
    $region45: #{tpu_custom_call.1} parent=1 // pred_fallthru
      _
    %v61 = vld [vmem:[%s0] sm:$0xf]
    %v62 = vld [vmem:[#allocation2] sm:$0xff]
    %v63 = vld [vmem:[#allocation2 + $0x8] sm:$0xff]
    %v64 = vld [vmem:[#allocation2 + $0x10] sm:$0xff]
    %v65 = vld [vmem:[%s4] sm:$0x1]
    %v67 = vlaneseq
    %v68 = vshrl.u32 %v67, 7
    %v69 = vsub.s32 0, %v68
    %v70 = vrot.slane %v65, %v69
    %vm72 = vcmask 195584
    %v74 = vsel %vm72, %v61, 0
    %76 = vmatprep.subr.mxu0 0.0
    %77 = vmatpush1.msra.mxu0 %v62
    %78 = vmatprep.subr.mxu0 0.0
    %79 = vmatpush1.msra.mxu0 %v63
    %80 = vmatprep.subr.mxu0 0.0
    %81 = vmatpush1.msra.mxu0 %v64
    %82 = vmatprep.subr.mxu0 0.0
    %83 = vmatpush1.msra.mxu0 0.0
    %84 = vmatprep.subr.mxu0 0.0
    %85 = vmatpush1.msra.mxu0 0.0
    %86 = vmatprep.subr.mxu0 0.0
    %87 = vmatpush1.msra.mxu0 0.0
    %88 = vmatprep.subr.mxu0 0.0
    %89 = vmatpush1.msra.mxu0 0.0
    %90 = vmatprep.subr.mxu0 0.0
    %91 = vmatpush1.msra.mxu0 0.0
    %92 = vmatprep.subr.mxu0 0.0
    %93 = vmatpush1.msra.mxu0 0.0
    %94 = vmatprep.subr.mxu0 0.0
    %95 = vmatpush1.msra.mxu0 0.0
    %96 = vmatprep.subr.mxu0 0.0
    %97 = vmatpush1.msra.mxu0 0.0
    %98 = vmatprep.subr.mxu0 0.0
    %99 = vmatpush1.msra.mxu0 0.0
    %100 = vmatprep.subr.mxu0 0.0
    %101 = vmatpush1.msra.mxu0 0.0
    %102 = vmatprep.subr.mxu0 0.0
    %103 = vmatpush1.msra.mxu0 0.0
    %104 = vmatprep.subr.mxu0 0.0
    %105 = vmatpush1.msra.mxu0 0.0
    %106 = vmatprep.subr.mxu0 0.0
    %107 = vmatpush1.msra.mxu0 0.0
    %108 = vmatprep.subr.mxu0 0.0
    %109 = vmatpush1.msra.mxu0 0.0
    %110 = vmatprep.subr.mxu0 0.0
    %111 = vmatpush1.msra.mxu0 0.0
    %112 = vmatprep.subr.mxu0 0.0
    %113 = vmatpush1.msra.mxu0 0.0
    %114 = vmatprep.subr.mxu0 0.0
    %115 = vmatpush1.msra.mxu0 0.0
    %116 = vmatprep.subr.mxu0 0.0
    %117 = vmatpush1.msra.mxu0 0.0
    %118 = vmatprep.subr.mxu0 0.0
    %119 = vmatpush1.msra.mxu0 0.0
    %120 = vmatprep.subr.mxu0 0.0
    %121 = vmatpush1.msra.mxu0 0.0
    %122 = vmatprep.subr.mxu0 0.0
    %123 = vmatpush1.msra.mxu0 0.0
    %124 = vmatprep.subr.mxu0 0.0
    %125 = vmatpush1.msra.mxu0 0.0
    %126 = vmatprep.subr.mxu0 0.0
    %127 = vmatpush1.msra.mxu0 0.0
    %128 = vmatprep.subr.mxu0 0.0
    %129 = vmatpush1.msra.mxu0 0.0
    %130 = vmatprep.subr.mxu0 0.0
    %131 = vmatpush1.msra.mxu0 0.0
    %132 = vmatprep.subr.mxu0 0.0
    %133 = vmatpush1.msra.mxu0 0.0
    %134 = vmatprep.subr.mxu0 0.0
    %135 = vmatpush1.msra.mxu0 0.0
    %136 = vmatprep.subr.mxu0 0.0
    %137 = vmatpush1.msra.mxu0 0.0
    %138 = vmatprep.subr.mxu0 0.0
    %139 = vmatpush1.msra.mxu0 0.0
    %140 = vmatprep.mubr.f32.mxu0 0.0
    %141 = vmatmul.mubr.f32.gmra.mrb[0].mxu0 %v74
    %v142 = vpop.f32.mrb[0].mxu0
    %v143 = vadd.f32 %v70, %v142
    %v144 = vpop.f32.mrb[0].mxu0
    %145 = vdwg.mxu0
    %v146 = vld [vmem:[%s1] sm:$0xf]
    %v147 = vld [vmem:[%s3] sm:$0x1]
    %149 = vset.pattern.permute.xlu0 0
    %150 = vperm.xlu0 %149, %v146
    %v151 = vpop.permute.xlu0 %150
    %v153 = vlaneseq
    %v154 = vshrl.u32 %v153, 7
    %v155 = vsub.s32 0, %v154
    %v156 = vrot.slane %v147, %v155
    %v157 = vmul.f32 %v151, %v156
    %v158 = vadd.f32 %v143, %v157
    %v159 = vld [vmem:[%s3 + $0x1] sm:$0x1]
    %160 = vset.pattern.permute.xlu0 1
    %161 = vperm.xlu0 %160, %v146
    %v162 = vpop.permute.xlu0 %161
    %v164 = vlaneseq
    %v165 = vshrl.u32 %v164, 7
    %v166 = vsub.s32 0, %v165
    %v167 = vrot.slane %v159, %v166
    %v168 = vmul.f32 %v162, %v167
    %v169 = vadd.f32 %v158, %v168
    %v170 = vmax.f32 %v169, 0.0
    %v171 = vld [vmem:[#allocation5] sm:$0xff]
    %v172 = vld [vmem:[#allocation5 + $0x8] sm:$0xff]
    %v173 = vld [vmem:[#allocation5 + $0x10] sm:$0xff]
    %v174 = vld [vmem:[#allocation5 + $0x18] sm:$0xff]
    %v175 = vld [vmem:[#allocation5 + $0x20] sm:$0xff]
    %v176 = vld [vmem:[#allocation5 + $0x28] sm:$0xff]
    %v177 = vld [vmem:[#allocation5 + $0x30] sm:$0xff]
    %v178 = vld [vmem:[#allocation5 + $0x38] sm:$0xff]
    %v179 = vld [vmem:[%s6] sm:$0x1]
    %v181 = vlaneseq
    %v182 = vshrl.u32 %v181, 7
    %v183 = vsub.s32 0, %v182
    %v184 = vrot.slane %v179, %v183
    %vm186 = vcmask 523264
    %v188 = vsel %vm186, %v170, 0
    %190 = vmatprep.subr.mxu0 0.0
    %191 = vmatpush1.msra.mxu0 %v171
    %192 = vmatprep.subr.mxu0 0.0
    %193 = vmatpush1.msra.mxu0 %v172
    %194 = vmatprep.subr.mxu0 0.0
    %195 = vmatpush1.msra.mxu0 %v173
    %196 = vmatprep.subr.mxu0 0.0
    %197 = vmatpush1.msra.mxu0 %v174
    %198 = vmatprep.subr.mxu0 0.0
    %199 = vmatpush1.msra.mxu0 %v175
    %200 = vmatprep.subr.mxu0 0.0
    %201 = vmatpush1.msra.mxu0 %v176
    %202 = vmatprep.subr.mxu0 0.0
    %203 = vmatpush1.msra.mxu0 %v177
    %204 = vmatprep.subr.mxu0 0.0
    %205 = vmatpush1.msra.mxu0 %v178
    %206 = vmatprep.subr.mxu0 0.0
    %207 = vmatpush1.msra.mxu0 0.0
    %208 = vmatprep.subr.mxu0 0.0
    %209 = vmatpush1.msra.mxu0 0.0
    %210 = vmatprep.subr.mxu0 0.0
    %211 = vmatpush1.msra.mxu0 0.0
    %212 = vmatprep.subr.mxu0 0.0
    %213 = vmatpush1.msra.mxu0 0.0
    %214 = vmatprep.subr.mxu0 0.0
    %215 = vmatpush1.msra.mxu0 0.0
    %216 = vmatprep.subr.mxu0 0.0
    %217 = vmatpush1.msra.mxu0 0.0
    %218 = vmatprep.subr.mxu0 0.0
    %219 = vmatpush1.msra.mxu0 0.0
    %220 = vmatprep.subr.mxu0 0.0
    %221 = vmatpush1.msra.mxu0 0.0
    %222 = vmatprep.subr.mxu0 0.0
    %223 = vmatpush1.msra.mxu0 0.0
    %224 = vmatprep.subr.mxu0 0.0
    %225 = vmatpush1.msra.mxu0 0.0
    %226 = vmatprep.subr.mxu0 0.0
    %227 = vmatpush1.msra.mxu0 0.0
    %228 = vmatprep.subr.mxu0 0.0
    %229 = vmatpush1.msra.mxu0 0.0
    %230 = vmatprep.subr.mxu0 0.0
    %231 = vmatpush1.msra.mxu0 0.0
    %232 = vmatprep.subr.mxu0 0.0
    %233 = vmatpush1.msra.mxu0 0.0
    %234 = vmatprep.subr.mxu0 0.0
    %235 = vmatpush1.msra.mxu0 0.0
    %236 = vmatprep.subr.mxu0 0.0
    %237 = vmatpush1.msra.mxu0 0.0
    %238 = vmatprep.subr.mxu0 0.0
    %239 = vmatpush1.msra.mxu0 0.0
    %240 = vmatprep.subr.mxu0 0.0
    %241 = vmatpush1.msra.mxu0 0.0
    %242 = vmatprep.subr.mxu0 0.0
    %243 = vmatpush1.msra.mxu0 0.0
    %244 = vmatprep.subr.mxu0 0.0
    %245 = vmatpush1.msra.mxu0 0.0
    %246 = vmatprep.subr.mxu0 0.0
    %247 = vmatpush1.msra.mxu0 0.0
    %248 = vmatprep.subr.mxu0 0.0
    %249 = vmatpush1.msra.mxu0 0.0
    %250 = vmatprep.subr.mxu0 0.0
    %251 = vmatpush1.msra.mxu0 0.0
    %252 = vmatprep.subr.mxu0 0.0
    %253 = vmatpush1.msra.mxu0 0.0
    %254 = vmatprep.mubr.f32.mxu0 0.0
    %255 = vmatmul.mubr.f32.gmra.mrb[0].mxu0 %v188
    %v256 = vpop.f32.mrb[0].mxu0
    %v257 = vadd.f32 %v184, %v256
    %v258 = vpop.f32.mrb[0].mxu0
    %259 = vdwg.mxu0
    %v260 = vmax.f32 %v257, 0.0
    %v261 = vld [vmem:[%s7] sm:$0x3]
    %v262 = vld [vmem:[%s8] sm:$0x3]
    %264 = vset.pattern.permute.xlu0 0
    %265 = vperm.xlu0 %264, %v262
    %v266 = vpop.permute.xlu0 %265
    %v269 = vsel %vm186, %v261, 0
    %v272 = vsel %vm186, %v260, 0
    %274 = vmatprep.subr.mxu0 0.0
    %275 = vmatpush1.xpose.msra.mxu0 %v272
    %276 = vmatprep.subr.mxu0 0.0
    %277 = vmatpush1.xpose.msra.mxu0 0.0
    %278 = vmatprep.subr.mxu0 0.0
    %279 = vmatpush1.xpose.msra.mxu0 0.0
    %280 = vmatprep.subr.mxu0 0.0
    %281 = vmatpush1.xpose.msra.mxu0 0.0
    %282 = vmatprep.subr.mxu0 0.0
    %283 = vmatpush1.xpose.msra.mxu0 0.0
    %284 = vmatprep.subr.mxu0 0.0
    %285 = vmatpush1.xpose.msra.mxu0 0.0
    %286 = vmatprep.subr.mxu0 0.0
    %287 = vmatpush1.xpose.msra.mxu0 0.0
    %288 = vmatprep.subr.mxu0 0.0
    %289 = vmatpush1.xpose.msra.mxu0 0.0
    %290 = vmatprep.subr.mxu0 0.0
    %291 = vmatpush1.xpose.msra.mxu0 0.0
    %292 = vmatprep.subr.mxu0 0.0
    %293 = vmatpush1.xpose.msra.mxu0 0.0
    %294 = vmatprep.subr.mxu0 0.0
    %295 = vmatpush1.xpose.msra.mxu0 0.0
    %296 = vmatprep.subr.mxu0 0.0
    %297 = vmatpush1.xpose.msra.mxu0 0.0
    %298 = vmatprep.subr.mxu0 0.0
    %299 = vmatpush1.xpose.msra.mxu0 0.0
    %300 = vmatprep.subr.mxu0 0.0
    %301 = vmatpush1.xpose.msra.mxu0 0.0
    %302 = vmatprep.subr.mxu0 0.0
    %303 = vmatpush1.xpose.msra.mxu0 0.0
    %304 = vmatprep.subr.mxu0 0.0
    %305 = vmatpush1.xpose.msra.mxu0 0.0
    %306 = vmatprep.subr.mxu0 0.0
    %307 = vmatpush1.xpose.msra.mxu0 0.0
    %308 = vmatprep.subr.mxu0 0.0
    %309 = vmatpush1.xpose.msra.mxu0 0.0
    %310 = vmatprep.subr.mxu0 0.0
    %311 = vmatpush1.xpose.msra.mxu0 0.0
    %312 = vmatprep.subr.mxu0 0.0
    %313 = vmatpush1.xpose.msra.mxu0 0.0
    %314 = vmatprep.subr.mxu0 0.0
    %315 = vmatpush1.xpose.msra.mxu0 0.0
    %316 = vmatprep.subr.mxu0 0.0
    %317 = vmatpush1.xpose.msra.mxu0 0.0
    %318 = vmatprep.subr.mxu0 0.0
    %319 = vmatpush1.xpose.msra.mxu0 0.0
    %320 = vmatprep.subr.mxu0 0.0
    %321 = vmatpush1.xpose.msra.mxu0 0.0
    %322 = vmatprep.subr.mxu0 0.0
    %323 = vmatpush1.xpose.msra.mxu0 0.0
    %324 = vmatprep.subr.mxu0 0.0
    %325 = vmatpush1.xpose.msra.mxu0 0.0
    %326 = vmatprep.subr.mxu0 0.0
    %327 = vmatpush1.xpose.msra.mxu0 0.0
    %328 = vmatprep.subr.mxu0 0.0
    %329 = vmatpush1.xpose.msra.mxu0 0.0
    %330 = vmatprep.subr.mxu0 0.0
    %331 = vmatpush1.xpose.msra.mxu0 0.0
    %332 = vmatprep.subr.mxu0 0.0
    %333 = vmatpush1.xpose.msra.mxu0 0.0
    %334 = vmatprep.subr.mxu0 0.0
    %335 = vmatpush1.xpose.msra.mxu0 0.0
    %336 = vmatprep.subr.mxu0 0.0
    %337 = vmatpush1.xpose.msra.mxu0 0.0
    %338 = vmatprep.mubr.f32.mxu0 0.0
    %339 = vmatmul.mubr.f32.gmra.mrb[0].mxu0 %v269
    %v340 = vpop.f32.mrb[0].mxu0
    %v341 = vadd.f32 %v266, %v340
    %v342 = vpop.f32.mrb[0].mxu0
    %343 = vdwg.mxu0
    %vm344 = vcmask 25600
    %345 = vst.msk [vmem:[#allocation7] sm:$0x3] %vm344, %v341
    // Predicated region
    $region46: #{tpu_custom_call.1} parent=1 // pred_check
      _
    $region47: #{tpu_custom_call.1} parent=1 // pred_check_branch
      %347 = sbr.rel (0) target = $region49
    $region48: #{tpu_custom_call.1} parent=1 // pred_region
      %s349 = ssub.s32 32, 32
      %350 = vsyncadd [#allocation4], %s349
      %s352 = sshll.u32 [#allocation7], 4
      %s353 = int_to_ptr.vmem [resolvable:$true] %s352
      %355 = dma.vmem_to_hbm [thread:$0]  %s353, 32, %s9, [#allocation4]
    $region49: #{tpu_custom_call.1} parent=1 // pred_fallthru
      _
    // Predicated region
    $region50: #{tpu_custom_call.1} parent=1 // pred_check
      _
    $region51: #{tpu_custom_call.1} parent=1 // pred_check_branch
      %357 = sbr.rel (0) target = $region53
    $region52: #{tpu_custom_call.1} parent=1 // pred_region
      %358 = dma.done [#allocation4], 32
    $region53: #{tpu_custom_call.1} parent=1 // pred_fallthru
      _
    %359 = vsyncpa [#allocation3], 1
    %360 = vsyncpa [#allocation6], 1
    %361 = vsyncpa [#allocation4], 1

</llo_original>
